<compile_context>
chip_gen: v5e
topology: v5e:2x2
jax: 0.10.0
libtpu: 0.0.40
codegen_flags: <defaults>
</compile_context>

<pallas_src>
import functools

import jax
import jax.numpy as jnp
import numpy as np
from jax import lax
from jax.experimental import pallas as pl
from jax.experimental.pallas import tpu as pltpu

EPS = 1e-5
_VMEM_LIMIT_BYTES = 32 * 1024 * 1024      # safe on v5e/v6e (128 MiB) and v7x (64 MiB)
_TILE_STREAM_BUDGET = 12 * 1024 * 1024    # budget for double-buffered streamed tiles


def _round_up(x, m):
    return (x + m - 1) // m * m


def _fold_bn(stats, gb, inv_n):
    """Fold training-mode BN (biased batch variance) + affine into per-feature
    scale/shift.  stats: (2, D) [sum; sum-of-squares] over the TRUE batch size,
    gb: (2, D) [gamma; beta]."""
    mu = stats[0:1, :] * inv_n
    var = jnp.maximum(stats[1:2, :] * inv_n - mu * mu, 0.0)
    scale = gb[0:1, :] * lax.rsqrt(var + EPS)
    shift = gb[1:2, :] - mu * scale
    return scale, shift


# ------------------------------------------------------------------------------------
# Stage 1 (stats-only sweep): accumulate per-feature sum / sum-of-squares of
# z1 = h @ w1.  z1 is never written to HBM.
# ------------------------------------------------------------------------------------
def _stage1_kernel(h_ref, w1_ref, stats1_ref):
    @pl.when(pl.program_id(0) == 0)
    def _():
        stats1_ref[...] = jnp.zeros_like(stats1_ref)

    z1 = jnp.dot(h_ref[...], w1_ref[...], preferred_element_type=jnp.float32)
    # Zero-padded tail rows give z1 == 0 and therefore contribute nothing here.
    stats1_ref[...] += jnp.concatenate(
        [jnp.sum(z1, axis=0, keepdims=True),
         jnp.sum(z1 * z1, axis=0, keepdims=True)], axis=0)


# ------------------------------------------------------------------------------------
# Stage 2: fold BN1 affine once (in-kernel, i==0), recompute z1 = h @ w1,
# h1 = relu(BN1(z1)), z2 = h1 @ w2 (stored, optionally bf16), accumulate z2 stats.
# ------------------------------------------------------------------------------------
def _stage2_kernel(h_ref, w1_ref, stats1_ref, gb1_ref, w2_ref,
                   z2_ref, stats2_ref, sc1_ref, *,
                   inv_n, n_pad_rows, matmul_dtype):
    i = pl.program_id(0)

    @pl.when(i == 0)
    def _():
        scale1, shift1 = _fold_bn(stats1_ref[...], gb1_ref[...], inv_n)
        sc1_ref[...] = jnp.concatenate([scale1, shift1], axis=0)
        stats2_ref[...] = jnp.zeros_like(stats2_ref)

    # Recompute z1 from h (cheaper than round-tripping it through HBM).
    z1 = jnp.dot(h_ref[...], w1_ref[...], preferred_element_type=jnp.float32)
    h1 = jnp.maximum(z1 * sc1_ref[0:1, :] + sc1_ref[1:2, :], 0.0)
    z2 = jnp.dot(h1.astype(matmul_dtype), w2_ref[...],
                 preferred_element_type=jnp.float32)

    z2_ref[...] = z2.astype(z2_ref.dtype)              # bf16 storage when requested
    stats2_ref[...] += jnp.concatenate(                # stats from the f32 dot output
        [jnp.sum(z2, axis=0, keepdims=True),
         jnp.sum(z2 * z2, axis=0, keepdims=True)], axis=0)

    if n_pad_rows:
        # Zero-padded input rows all produce the same z2 row (relu(shift1) @ w2) and
        # all live in the last tile: remove their stats contribution there only.
        @pl.when(i == pl.num_programs(0) - 1)
        def _():
            z2_pad = z2[-1:, :]                        # any padded row; all identical
            stats2_ref[...] -= float(n_pad_rows) * jnp.concatenate(
                [z2_pad, z2_pad * z2_pad], axis=0)


# ------------------------------------------------------------------------------------
# Stage 3: out = relu(BN2(z2)) with the BN2 affine folded per step (tiny (1, D) math,
# keeps the grid axis "parallel" so v7x shards it across both TensorCores).
# ------------------------------------------------------------------------------------
def _stage3_kernel(z2_ref, stats2_ref, gb2_ref, out_ref, *, inv_n):
    scale2, shift2 = _fold_bn(stats2_ref[...], gb2_ref[...], inv_n)
    z2 = z2_ref[...].astype(jnp.float32)
    out_ref[...] = jnp.maximum(z2 * scale2 + shift2, 0.0).astype(out_ref.dtype)


def apply_node_func(h, w1, g1, be1, w2, g2, be2, *,
                    block_rows=8192, matmul_dtype=jnp.float32):
    """ApplyNodeFunc forward.  h: (N, in_dim) -> (N, out_dim) float32."""
    n, in_dim = h.shape
    hidden = w1.shape[1]
    out_dim = w2.shape[1]

    matmul_dtype = jnp.dtype(matmul_dtype)
    inter_dtype = jnp.bfloat16 if matmul_dtype == jnp.bfloat16 else jnp.float32
    ib_in = matmul_dtype.itemsize
    ib_z2 = jnp.dtype(inter_dtype).itemsize

    # Row tile: multiple of 8 sublanes, capped so the double-buffered streamed tiles of
    # the widest stage fit comfortably in the default scoped VMEM on v5e/v6e/v7x.
    per_row_stream = 2 * max(in_dim * ib_in + out_dim * ib_z2,   # stage 2
                             out_dim * ib_z2 + out_dim * 4,      # stage 3
                             in_dim * ib_in)                     # stage 1
    rows_cap = max(8, _TILE_STREAM_BUDGET // per_row_stream // 8 * 8)
    tn = _round_up(min(block_rows, rows_cap, _round_up(n, 8)), 8)
    n_pad = _round_up(n, tn)
    grid = n_pad // tn
    n_pad_rows = n_pad - n

    h = h.astype(matmul_dtype)
    if n_pad_rows:
        h = jnp.pad(h, ((0, n_pad_rows), (0, 0)))
    w1 = w1.astype(matmul_dtype)
    w2 = w2.astype(matmul_dtype)
    gb1 = jnp.concatenate([g1.reshape(1, hidden), be1.reshape(1, hidden)],
                          axis=0).astype(jnp.float32)
    gb2 = jnp.concatenate([g2.reshape(1, out_dim), be2.reshape(1, out_dim)],
                          axis=0).astype(jnp.float32)
    inv_n = 1.0 / n

    def resident(shape):     # weights / (2, D) vectors: one block, never re-DMA'd
        nd = len(shape)
        return pl.BlockSpec(shape, lambda i, _nd=nd: (0,) * _nd)

    def rows(d):             # (tn, d) row tiles marching over N
        return pl.BlockSpec((tn, d), lambda i: (i, 0))

    def cparams(sem):
        return pltpu.CompilerParams(dimension_semantics=(sem,),
                                    vmem_limit_bytes=_VMEM_LIMIT_BYTES)

    # ---------------- stage 1: z1 statistics only ----------------
    stats1 = pl.pallas_call(
        _stage1_kernel,
        grid=(grid,),
        in_specs=[rows(in_dim), resident((in_dim, hidden))],
        out_specs=resident((2, hidden)),
        out_shape=jax.ShapeDtypeStruct((2, hidden), jnp.float32),
        compiler_params=cparams("arbitrary"),
    )(h, w1)

    # ---------------- stage 2: BN1+ReLU folded, z2 + statistics ----------------
    kern2 = functools.partial(_stage2_kernel, inv_n=inv_n,
                              n_pad_rows=n_pad_rows, matmul_dtype=matmul_dtype)
    z2, stats2 = pl.pallas_call(
        kern2,
        grid=(grid,),
        in_specs=[rows(in_dim), resident((in_dim, hidden)),
                  resident((2, hidden)), resident((2, hidden)),
                  resident((hidden, out_dim))],
        out_specs=(rows(out_dim), resident((2, out_dim))),
        out_shape=(jax.ShapeDtypeStruct((n_pad, out_dim), inter_dtype),
                   jax.ShapeDtypeStruct((2, out_dim), jnp.float32)),
        scratch_shapes=[pltpu.VMEM((2, hidden), jnp.float32)],
        compiler_params=cparams("arbitrary"),
    )(h, w1, stats1, gb1, w2)

    # ---------------- stage 3: BN2 + ReLU ----------------
    kern3 = functools.partial(_stage3_kernel, inv_n=inv_n)
    out = pl.pallas_call(
        kern3,
        grid=(grid,),
        in_specs=[rows(out_dim), resident((2, out_dim)), resident((2, out_dim))],
        out_specs=rows(out_dim),
        out_shape=jax.ShapeDtypeStruct((n_pad, out_dim), jnp.float32),
        compiler_params=cparams("parallel"),
    )(z2, stats2, gb2)

    return out[:n]


apply_node_func_jit = jax.jit(apply_node_func,
                              static_argnames=("block_rows", "matmul_dtype"))


def _reference(h, w1, b1, g1, be1, w2, b2, g2, be2):
    """Faithful re-statement of the PyTorch module (with linear biases)."""
    def bn(x, g, b):
        mu = jnp.mean(x, axis=0, keepdims=True)
        var = jnp.mean((x - mu) ** 2, axis=0, keepdims=True)
        return (x - mu) / jnp.sqrt(var + EPS) * g + b

    h1 = jax.nn.relu(bn(h @ w1 + b1, g1, be1))
    z2 = h1 @ w2 + b2
    return jax.nn.relu(bn(z2, g2, be2))


if __name__ == "__main__":
    # Small shapes: 60 graph nodes (exercises row padding + stats fix-up), in=16,
    # hidden=out=32.
    N, IN_DIM, HIDDEN, OUT_DIM = 60, 16, 32, 32

    key = jax.random.PRNGKey(0)
    kh, kw1, kb1, kw2, kb2, kg1, kbe1, kg2, kbe2 = jax.random.split(key, 9)

    h = jax.random.normal(kh, (N, IN_DIM), jnp.float32)
    w1 = jax.random.normal(kw1, (IN_DIM, HIDDEN), jnp.float32) / np.sqrt(IN_DIM)
    b1 = 0.01 * jax.random.normal(kb1, (1, HIDDEN), jnp.float32)
    w2 = jax.random.normal(kw2, (HIDDEN, OUT_DIM), jnp.float32) / np.sqrt(HIDDEN)
    b2 = 0.01 * jax.random.normal(kb2, (1, OUT_DIM), jnp.float32)
    g1 = 1.0 + 0.1 * jax.random.normal(kg1, (1, HIDDEN), jnp.float32)
    be1 = 0.1 * jax.random.normal(kbe1, (1, HIDDEN), jnp.float32)
    g2 = 1.0 + 0.1 * jax.random.normal(kg2, (1, OUT_DIM), jnp.float32)
    be2 = 0.1 * jax.random.normal(kbe2, (1, OUT_DIM), jnp.float32)

    # Reference includes the linear biases; the kernel drops them (exact cancellation
    # inside training-mode BatchNorm).
    ref = np.asarray(_reference(h, w1, b1, g1, be1, w2, b2, g2, be2))

    # f32 path, single row tile (N=60 -> padded to 64 rows, grid=1).
    out = jax.block_until_ready(apply_node_func_jit(h, w1, g1, be1, w2, g2, be2))
    np.testing.assert_allclose(np.asarray(out), ref, rtol=2e-5, atol=2e-5)

    # f32 path, multi-tile grid (block_rows=16 -> grid=4): exercises cross-step stat
    # accumulation and the last-step pad fix-up.
    out_tiled = jax.block_until_ready(
        apply_node_func_jit(h, w1, g1, be1, w2, g2, be2, block_rows=16))
    np.testing.assert_allclose(np.asarray(out_tiled), ref, rtol=2e-5, atol=2e-5)

    # bf16 MXU operands + bf16 z2 intermediate (v6e/v7x fast path), f32 accumulation
    # and f32 BN/ReLU math.
    out_bf16 = jax.block_until_ready(
        apply_node_func_jit(h, w1, g1, be1, w2, g2, be2, matmul_dtype=jnp.bfloat16))
    np.testing.assert_allclose(np.asarray(out_bf16), ref, rtol=5e-2, atol=5e-2)

    print("KERNEL_OK")
</pallas_src>

<mosaic_0001>
module attributes {stable_mosaic.version = 11 : i64} {
  func.func @_stage1_kernel(%arg0: i32, %arg1: memref<64x16xf32, #tpu.memory_space<vmem>>, %arg2: memref<16x32xf32, #tpu.memory_space<vmem>>, %arg3: memref<2x32xf32, #tpu.memory_space<vmem>>) attributes {dimension_semantics = [#tpu.dimension_semantics<arbitrary>], iteration_bounds = array<i64: 1>, scalar_prefetch = 0 : i64, scratch_operands = 0 : i64, tpu.core_type = #tpu.core_type<tc>, window_params = [{transform_indices = @transform_0, window_bounds = array<i64: 64, 16>}, {pipeline_mode = #tpu.pipeline_mode<synchronous>, transform_indices = @transform_1, window_bounds = array<i64: 16, 32>}, {pipeline_mode = #tpu.pipeline_mode<synchronous>, transform_indices = @transform_2, window_bounds = array<i64: 2, 32>}]} {
    %c0_i32 = arith.constant 0 : i32
    %0 = arith.cmpi eq, %arg0, %c0_i32 : i32
    %1 = arith.extui %0 : i1 to i32
    %c0_i32_0 = arith.constant 0 : i32
    %2 = arith.cmpi ne, %1, %c0_i32_0 : i32
    scf.if %2 {
      %cst_10 = arith.constant 0.000000e+00 : f32
      %15 = vector.broadcast %cst_10 : f32 to vector<2x32xf32>
      %c0_11 = arith.constant 0 : index
      %c0_12 = arith.constant 0 : index
      %16 = vector.load %arg3[%c0_11, %c0_12] : memref<2x32xf32, #tpu.memory_space<vmem>>, vector<2x32xf32>
      tpu.vector_store %arg3[%c0_11, %c0_12], %15 {strides = array<i32>} : memref<2x32xf32, #tpu.memory_space<vmem>>, vector<2x32xf32>,
    } else {
    }
    %c0 = arith.constant 0 : index
    %c0_1 = arith.constant 0 : index
    %3 = vector.load %arg1[%c0, %c0_1] : memref<64x16xf32, #tpu.memory_space<vmem>>, vector<64x16xf32>
    %c0_2 = arith.constant 0 : index
    %c0_3 = arith.constant 0 : index
    %4 = vector.load %arg2[%c0_2, %c0_3] : memref<16x32xf32, #tpu.memory_space<vmem>>, vector<16x32xf32>
    %cst = arith.constant dense<0.000000e+00> : vector<64x32xf32>
    %5 = tpu.matmul %3, %4, %cst {dimension_numbers = #tpu.dot_dimension_numbers<[1], [0], [0], [1], [0, 0, 1, 1], [], []>} : vector<64x16xf32>, vector<16x32xf32>, vector<64x32xf32> -> vector<64x32xf32>
    %c0_4 = arith.constant 0 : index
    %c0_5 = arith.constant 0 : index
    %6 = vector.load %arg3[%c0_4, %c0_5] : memref<2x32xf32, #tpu.memory_space<vmem>>, vector<2x32xf32>
    %cst_6 = arith.constant dense<0.000000e+00> : vector<32xf32>
    %7 = vector.multi_reduction <add>, %5, %cst_6 [0] : vector<64x32xf32> to vector<32xf32>
    %8 = vector.shape_cast %7 : vector<32xf32> to vector<1x32xf32>
    %9 = arith.mulf %5, %5 : vector<64x32xf32>
    %cst_7 = arith.constant dense<0.000000e+00> : vector<32xf32>
    %10 = vector.multi_reduction <add>, %9, %cst_7 [0] : vector<64x32xf32> to vector<32xf32>
    %11 = vector.shape_cast %10 : vector<32xf32> to vector<1x32xf32>
    %12 = tpu.concatenate %8, %11 in 0 : vector<1x32xf32>, vector<1x32xf32> -> vector<2x32xf32>
    %13 = arith.addf %6, %12 : vector<2x32xf32>
    %c0_8 = arith.constant 0 : index
    %c0_9 = arith.constant 0 : index
    %14 = vector.load %arg3[%c0_8, %c0_9] : memref<2x32xf32, #tpu.memory_space<vmem>>, vector<2x32xf32>
    tpu.vector_store %arg3[%c0_8, %c0_9], %13 {strides = array<i32>} : memref<2x32xf32, #tpu.memory_space<vmem>>, vector<2x32xf32>,
    return
  }
  func.func @transform_0(%arg0: i32) -> (i32, i32) {
    %c0_i32 = arith.constant 0 : i32
    %c0_i32_0 = arith.constant 0 : i32
    return %arg0, %c0_i32 : i32, i32
  }
  func.func @transform_1(%arg0: i32) -> (i32, i32) {
    %c0_i32 = arith.constant 0 : i32
    %c0_i32_0 = arith.constant 0 : i32
    %c0_i32_1 = arith.constant 0 : i32
    return %c0_i32, %c0_i32_0 : i32, i32
  }
  func.func @transform_2(%arg0: i32) -> (i32, i32) {
    %c0_i32 = arith.constant 0 : i32
    %c0_i32_0 = arith.constant 0 : i32
    %c0_i32_1 = arith.constant 0 : i32
    return %c0_i32, %c0_i32_0 : i32, i32
  }
}

module attributes {stable_mosaic.version = 11 : i64} {
  func.func @_stage3_kernel(%arg0: i32, %arg1: memref<64x32xf32, #tpu.memory_space<vmem>>, %arg2: memref<2x32xf32, #tpu.memory_space<vmem>>, %arg3: memref<2x32xf32, #tpu.memory_space<vmem>>, %arg4: memref<64x32xf32, #tpu.memory_space<vmem>>) attributes {dimension_semantics = [#tpu.dimension_semantics<parallel>], iteration_bounds = array<i64: 1>, scalar_prefetch = 0 : i64, scratch_operands = 0 : i64, tpu.core_type = #tpu.core_type<tc>, window_params = [{transform_indices = @transform_0, window_bounds = array<i64: 64, 32>}, {pipeline_mode = #tpu.pipeline_mode<synchronous>, transform_indices = @transform_1, window_bounds = array<i64: 2, 32>}, {pipeline_mode = #tpu.pipeline_mode<synchronous>, transform_indices = @transform_2, window_bounds = array<i64: 2, 32>}, {transform_indices = @transform_3, window_bounds = array<i64: 64, 32>}]} {
    %c0 = arith.constant 0 : index
    %c0_0 = arith.constant 0 : index
    %0 = vector.load %arg2[%c0, %c0_0] : memref<2x32xf32, #tpu.memory_space<vmem>>, vector<2x32xf32>
    %c0_1 = arith.constant 0 : index
    %c0_2 = arith.constant 0 : index
    %1 = vector.load %arg3[%c0_1, %c0_2] : memref<2x32xf32, #tpu.memory_space<vmem>>, vector<2x32xf32>
    %2 = vector.extract_strided_slice %0 {offsets = [0, 0], sizes = [1, 32], strides = [1, 1]} : vector<2x32xf32> to vector<1x32xf32>
    %cst = arith.constant 0.0166666675 : f32
    %3 = vector.broadcast %cst : f32 to vector<1x32xf32>
    %4 = arith.mulf %2, %3 : vector<1x32xf32>
    %5 = vector.extract_strided_slice %0 {offsets = [1, 0], sizes = [1, 32], strides = [1, 1]} : vector<2x32xf32> to vector<1x32xf32>
    %cst_3 = arith.constant 0.0166666675 : f32
    %6 = vector.broadcast %cst_3 : f32 to vector<1x32xf32>
    %7 = arith.mulf %5, %6 : vector<1x32xf32>
    %8 = arith.mulf %4, %4 : vector<1x32xf32>
    %9 = arith.subf %7, %8 : vector<1x32xf32>
    %cst_4 = arith.constant 0.000000e+00 : f32
    %10 = vector.broadcast %cst_4 : f32 to vector<1x32xf32>
    %11 = arith.maximumf %9, %10 : vector<1x32xf32>
    %12 = vector.extract_strided_slice %1 {offsets = [0, 0], sizes = [1, 32], strides = [1, 1]} : vector<2x32xf32> to vector<1x32xf32>
    %cst_5 = arith.constant 9.99999974E-6 : f32
    %13 = vector.broadcast %cst_5 : f32 to vector<1x32xf32>
    %14 = arith.addf %11, %13 : vector<1x32xf32>
    %15 = math.rsqrt %14 : vector<1x32xf32>
    %16 = arith.mulf %12, %15 : vector<1x32xf32>
    %17 = vector.extract_strided_slice %1 {offsets = [1, 0], sizes = [1, 32], strides = [1, 1]} : vector<2x32xf32> to vector<1x32xf32>
    %18 = arith.mulf %4, %16 : vector<1x32xf32>
    %19 = arith.subf %17, %18 : vector<1x32xf32>
    %c0_6 = arith.constant 0 : index
    %c0_7 = arith.constant 0 : index
    %20 = vector.load %arg1[%c0_6, %c0_7] : memref<64x32xf32, #tpu.memory_space<vmem>>, vector<64x32xf32>
    %21 = vector.broadcast %16 : vector<1x32xf32> to vector<64x32xf32>
    %22 = arith.mulf %20, %21 : vector<64x32xf32>
    %23 = vector.broadcast %19 : vector<1x32xf32> to vector<64x32xf32>
    %24 = arith.addf %22, %23 : vector<64x32xf32>
    %cst_8 = arith.constant 0.000000e+00 : f32
    %25 = vector.broadcast %cst_8 : f32 to vector<64x32xf32>
    %26 = arith.maximumf %24, %25 : vector<64x32xf32>
    %c0_9 = arith.constant 0 : index
    %c0_10 = arith.constant 0 : index
    %27 = vector.load %arg4[%c0_9, %c0_10] : memref<64x32xf32, #tpu.memory_space<vmem>>, vector<64x32xf32>
    tpu.vector_store %arg4[%c0_9, %c0_10], %26 {strides = array<i32>} : memref<64x32xf32, #tpu.memory_space<vmem>>, vector<64x32xf32>,
    return
  }
  func.func @transform_0(%arg0: i32) -> (i32, i32) {
    %c0_i32 = arith.constant 0 : i32
    %c0_i32_0 = arith.constant 0 : i32
    return %arg0, %c0_i32 : i32, i32
  }
  func.func @transform_1(%arg0: i32) -> (i32, i32) {
    %c0_i32 = arith.constant 0 : i32
    %c0_i32_0 = arith.constant 0 : i32
    %c0_i32_1 = arith.constant 0 : i32
    return %c0_i32, %c0_i32_0 : i32, i32
  }
  func.func @transform_2(%arg0: i32) -> (i32, i32) {
    %c0_i32 = arith.constant 0 : i32
    %c0_i32_0 = arith.constant 0 : i32
    %c0_i32_1 = arith.constant 0 : i32
    return %c0_i32, %c0_i32_0 : i32, i32
  }
  func.func @transform_3(%arg0: i32) -> (i32, i32) {
    %c0_i32 = arith.constant 0 : i32
    %c0_i32_0 = arith.constant 0 : i32
    return %arg0, %c0_i32 : i32, i32
  }
}

module attributes {stable_mosaic.version = 11 : i64} {
  func.func @_stage2_kernel(%arg0: i32, %arg1: memref<64x16xf32, #tpu.memory_space<vmem>>, %arg2: memref<16x32xf32, #tpu.memory_space<vmem>>, %arg3: memref<2x32xf32, #tpu.memory_space<vmem>>, %arg4: memref<2x32xf32, #tpu.memory_space<vmem>>, %arg5: memref<32x32xf32, #tpu.memory_space<vmem>>, %arg6: memref<64x32xf32, #tpu.memory_space<vmem>>, %arg7: memref<2x32xf32, #tpu.memory_space<vmem>>, %arg8: memref<2x32xf32, #tpu.memory_space<vmem>>) attributes {dimension_semantics = [#tpu.dimension_semantics<arbitrary>], iteration_bounds = array<i64: 1>, scalar_prefetch = 0 : i64, scratch_operands = 1 : i64, tpu.core_type = #tpu.core_type<tc>, window_params = [{transform_indices = @transform_0, window_bounds = array<i64: 64, 16>}, {pipeline_mode = #tpu.pipeline_mode<synchronous>, transform_indices = @transform_1, window_bounds = array<i64: 16, 32>}, {pipeline_mode = #tpu.pipeline_mode<synchronous>, transform_indices = @transform_2, window_bounds = array<i64: 2, 32>}, {pipeline_mode = #tpu.pipeline_mode<synchronous>, transform_indices = @transform_3, window_bounds = array<i64: 2, 32>}, {pipeline_mode = #tpu.pipeline_mode<synchronous>, transform_indices = @transform_4, window_bounds = array<i64: 32, 32>}, {transform_indices = @transform_5, window_bounds = array<i64: 64, 32>}, {pipeline_mode = #tpu.pipeline_mode<synchronous>, transform_indices = @transform_6, window_bounds = array<i64: 2, 32>}]} {
    %c0_i32 = arith.constant 0 : i32
    %0 = arith.cmpi eq, %arg0, %c0_i32 : i32
    %1 = arith.extui %0 : i1 to i32
    %c0_i32_0 = arith.constant 0 : i32
    %2 = arith.cmpi ne, %1, %c0_i32_0 : i32
    scf.if %2 {
      %c0_21 = arith.constant 0 : index
      %c0_22 = arith.constant 0 : index
      %29 = vector.load %arg3[%c0_21, %c0_22] : memref<2x32xf32, #tpu.memory_space<vmem>>, vector<2x32xf32>
      %c0_23 = arith.constant 0 : index
      %c0_24 = arith.constant 0 : index
      %30 = vector.load %arg4[%c0_23, %c0_24] : memref<2x32xf32, #tpu.memory_space<vmem>>, vector<2x32xf32>
      %31 = vector.extract_strided_slice %29 {offsets = [0, 0], sizes = [1, 32], strides = [1, 1]} : vector<2x32xf32> to vector<1x32xf32>
      %cst_25 = arith.constant 0.0166666675 : f32
      %32 = vector.broadcast %cst_25 : f32 to vector<1x32xf32>
      %33 = arith.mulf %31, %32 : vector<1x32xf32>
      %34 = vector.extract_strided_slice %29 {offsets = [1, 0], sizes = [1, 32], strides = [1, 1]} : vector<2x32xf32> to vector<1x32xf32>
      %cst_26 = arith.constant 0.0166666675 : f32
      %35 = vector.broadcast %cst_26 : f32 to vector<1x32xf32>
      %36 = arith.mulf %34, %35 : vector<1x32xf32>
      %37 = arith.mulf %33, %33 : vector<1x32xf32>
      %38 = arith.subf %36, %37 : vector<1x32xf32>
      %cst_27 = arith.constant 0.000000e+00 : f32
      %39 = vector.broadcast %cst_27 : f32 to vector<1x32xf32>
      %40 = arith.maximumf %38, %39 : vector<1x32xf32>
      %41 = vector.extract_strided_slice %30 {offsets = [0, 0], sizes = [1, 32], strides = [1, 1]} : vector<2x32xf32> to vector<1x32xf32>
      %cst_28 = arith.constant 9.99999974E-6 : f32
      %42 = vector.broadcast %cst_28 : f32 to vector<1x32xf32>
      %43 = arith.addf %40, %42 : vector<1x32xf32>
      %44 = math.rsqrt %43 : vector<1x32xf32>
      %45 = arith.mulf %41, %44 : vector<1x32xf32>
      %46 = vector.extract_strided_slice %30 {offsets = [1, 0], sizes = [1, 32], strides = [1, 1]} : vector<2x32xf32> to vector<1x32xf32>
      %47 = arith.mulf %33, %45 : vector<1x32xf32>
      %48 = arith.subf %46, %47 : vector<1x32xf32>
      %49 = tpu.concatenate %45, %48 in 0 : vector<1x32xf32>, vector<1x32xf32> -> vector<2x32xf32>
      %c0_29 = arith.constant 0 : index
      %c0_30 = arith.constant 0 : index
      %50 = vector.load %arg8[%c0_29, %c0_30] : memref<2x32xf32, #tpu.memory_space<vmem>>, vector<2x32xf32>
      tpu.vector_store %arg8[%c0_29, %c0_30], %49 {strides = array<i32>} : memref<2x32xf32, #tpu.memory_space<vmem>>, vector<2x32xf32>,
      %cst_31 = arith.constant 0.000000e+00 : f32
      %51 = vector.broadcast %cst_31 : f32 to vector<2x32xf32>
      %c0_32 = arith.constant 0 : index
      %c0_33 = arith.constant 0 : index
      %52 = vector.load %arg7[%c0_32, %c0_33] : memref<2x32xf32, #tpu.memory_space<vmem>>, vector<2x32xf32>
      tpu.vector_store %arg7[%c0_32, %c0_33], %51 {strides = array<i32>} : memref<2x32xf32, #tpu.memory_space<vmem>>, vector<2x32xf32>,
    } else {
    }
    %c0 = arith.constant 0 : index
    %c0_1 = arith.constant 0 : index
    %3 = vector.load %arg1[%c0, %c0_1] : memref<64x16xf32, #tpu.memory_space<vmem>>, vector<64x16xf32>
    %c0_2 = arith.constant 0 : index
    %c0_3 = arith.constant 0 : index
    %4 = vector.load %arg2[%c0_2, %c0_3] : memref<16x32xf32, #tpu.memory_space<vmem>>, vector<16x32xf32>
    %cst = arith.constant dense<0.000000e+00> : vector<64x32xf32>
    %5 = tpu.matmul %3, %4, %cst {dimension_numbers = #tpu.dot_dimension_numbers<[1], [0], [0], [1], [0, 0, 1, 1], [], []>} : vector<64x16xf32>, vector<16x32xf32>, vector<64x32xf32> -> vector<64x32xf32>
    %c0_4 = arith.constant 0 : index
    %c0_5 = arith.constant 0 : index
    %6 = vector.load %arg8[%c0_4, %c0_5] : memref<2x32xf32, #tpu.memory_space<vmem>>, vector<1x32xf32>
    %7 = vector.broadcast %6 : vector<1x32xf32> to vector<64x32xf32>
    %8 = arith.mulf %5, %7 : vector<64x32xf32>
    %c1 = arith.constant 1 : index
    %c0_6 = arith.constant 0 : index
    %9 = vector.load %arg8[%c1, %c0_6] : memref<2x32xf32, #tpu.memory_space<vmem>>, vector<1x32xf32>
    %10 = vector.broadcast %9 : vector<1x32xf32> to vector<64x32xf32>
    %11 = arith.addf %8, %10 : vector<64x32xf32>
    %cst_7 = arith.constant 0.000000e+00 : f32
    %12 = vector.broadcast %cst_7 : f32 to vector<64x32xf32>
    %13 = arith.maximumf %11, %12 : vector<64x32xf32>
    %c0_8 = arith.constant 0 : index
    %c0_9 = arith.constant 0 : index
    %14 = vector.load %arg5[%c0_8, %c0_9] : memref<32x32xf32, #tpu.memory_space<vmem>>, vector<32x32xf32>
    %cst_10 = arith.constant dense<0.000000e+00> : vector<64x32xf32>
    %15 = tpu.matmul %13, %14, %cst_10 {dimension_numbers = #tpu.dot_dimension_numbers<[1], [0], [0], [1], [0, 0, 1, 1], [], []>} : vector<64x32xf32>, vector<32x32xf32>, vector<64x32xf32> -> vector<64x32xf32>
    %c0_11 = arith.constant 0 : index
    %c0_12 = arith.constant 0 : index
    %16 = vector.load %arg6[%c0_11, %c0_12] : memref<64x32xf32, #tpu.memory_space<vmem>>, vector<64x32xf32>
    tpu.vector_store %arg6[%c0_11, %c0_12], %15 {strides = array<i32>} : memref<64x32xf32, #tpu.memory_space<vmem>>, vector<64x32xf32>,
    %c0_13 = arith.constant 0 : index
    %c0_14 = arith.constant 0 : index
    %17 = vector.load %arg7[%c0_13, %c0_14] : memref<2x32xf32, #tpu.memory_space<vmem>>, vector<2x32xf32>
    %cst_15 = arith.constant dense<0.000000e+00> : vector<32xf32>
    %18 = vector.multi_reduction <add>, %15, %cst_15 [0] : vector<64x32xf32> to vector<32xf32>
    %19 = vector.shape_cast %18 : vector<32xf32> to vector<1x32xf32>
    %20 = arith.mulf %15, %15 : vector<64x32xf32>
    %cst_16 = arith.constant dense<0.000000e+00> : vector<32xf32>
    %21 = vector.multi_reduction <add>, %20, %cst_16 [0] : vector<64x32xf32> to vector<32xf32>
    %22 = vector.shape_cast %21 : vector<32xf32> to vector<1x32xf32>
    %23 = tpu.concatenate %19, %22 in 0 : vector<1x32xf32>, vector<1x32xf32> -> vector<2x32xf32>
    %24 = arith.addf %17, %23 : vector<2x32xf32>
    %c0_17 = arith.constant 0 : index
    %c0_18 = arith.constant 0 : index
    %25 = vector.load %arg7[%c0_17, %c0_18] : memref<2x32xf32, #tpu.memory_space<vmem>>, vector<2x32xf32>
    tpu.vector_store %arg7[%c0_17, %c0_18], %24 {strides = array<i32>} : memref<2x32xf32, #tpu.memory_space<vmem>>, vector<2x32xf32>,
    %c0_i32_19 = arith.constant 0 : i32
    %26 = arith.cmpi eq, %arg0, %c0_i32_19 : i32
    %27 = arith.extui %26 : i1 to i32
    %c0_i32_20 = arith.constant 0 : i32
    %28 = arith.cmpi ne, %27, %c0_i32_20 : i32
    scf.if %28 {
      %29 = vector.extract_strided_slice %15 {offsets = [63, 0], sizes = [1, 32], strides = [1, 1]} : vector<64x32xf32> to vector<1x32xf32>
      %c0_21 = arith.constant 0 : index
      %c0_22 = arith.constant 0 : index
      %30 = vector.load %arg7[%c0_21, %c0_22] : memref<2x32xf32, #tpu.memory_space<vmem>>, vector<2x32xf32>
      %31 = arith.mulf %29, %29 : vector<1x32xf32>
      %32 = tpu.concatenate %29, %31 in 0 : vector<1x32xf32>, vector<1x32xf32> -> vector<2x32xf32>
      %cst_23 = arith.constant 4.000000e+00 : f32
      %33 = vector.broadcast %cst_23 : f32 to vector<2x32xf32>
      %34 = arith.mulf %33, %32 : vector<2x32xf32>
      %35 = arith.subf %30, %34 : vector<2x32xf32>
      %c0_24 = arith.constant 0 : index
      %c0_25 = arith.constant 0 : index
      %36 = vector.load %arg7[%c0_24, %c0_25] : memref<2x32xf32, #tpu.memory_space<vmem>>, vector<2x32xf32>
      tpu.vector_store %arg7[%c0_24, %c0_25], %35 {strides = array<i32>} : memref<2x32xf32, #tpu.memory_space<vmem>>, vector<2x32xf32>,
    } else {
    }
    return
  }
  func.func @transform_0(%arg0: i32) -> (i32, i32) {
    %c0_i32 = arith.constant 0 : i32
    %c0_i32_0 = arith.constant 0 : i32
    return %arg0, %c0_i32 : i32, i32
  }
  func.func @transform_1(%arg0: i32) -> (i32, i32) {
    %c0_i32 = arith.constant 0 : i32
    %c0_i32_0 = arith.constant 0 : i32
    %c0_i32_1 = arith.constant 0 : i32
    return %c0_i32, %c0_i32_0 : i32, i32
  }
  func.func @transform_2(%arg0: i32) -> (i32, i32) {
    %c0_i32 = arith.constant 0 : i32
    %c0_i32_0 = arith.constant 0 : i32
    %c0_i32_1 = arith.constant 0 : i32
    return %c0_i32, %c0_i32_0 : i32, i32
  }
  func.func @transform_3(%arg0: i32) -> (i32, i32) {
    %c0_i32 = arith.constant 0 : i32
    %c0_i32_0 = arith.constant 0 : i32
    %c0_i32_1 = arith.constant 0 : i32
    return %c0_i32, %c0_i32_0 : i32, i32
  }
  func.func @transform_4(%arg0: i32) -> (i32, i32) {
    %c0_i32 = arith.constant 0 : i32
    %c0_i32_0 = arith.constant 0 : i32
    %c0_i32_1 = arith.constant 0 : i32
    return %c0_i32, %c0_i32_0 : i32, i32
  }
  func.func @transform_5(%arg0: i32) -> (i32, i32) {
    %c0_i32 = arith.constant 0 : i32
    %c0_i32_0 = arith.constant 0 : i32
    return %arg0, %c0_i32 : i32, i32
  }
  func.func @transform_6(%arg0: i32) -> (i32, i32) {
    %c0_i32 = arith.constant 0 : i32
    %c0_i32_0 = arith.constant 0 : i32
    %c0_i32_1 = arith.constant 0 : i32
    return %c0_i32, %c0_i32_0 : i32, i32
  }
}

</mosaic_0001>

<llo_original>
// kernel: apply_node_func.3
$region0: #{apply_node_func.3}
  #allocation0 [shape = 'u32[]', space=smem, size = 0x4, offset = 0x4, fixed_abs, tag = 'smem constant byte address 0x4 - core index']
  #allocation1 [shape = 'u32[72,128]{1,0:T(1,128)}', space=vmem, size = 0x9000, scoped, tag = 'internal scratch']
  %s0 = inlined_call_operand.vmem [shape: f32[64,16], index: 0, kind: input, shape index: {}]
  %s1 = inlined_call_operand.vmem [shape: f32[16,32], index: 1, kind: input, shape index: {}]
  %s2 = inlined_call_operand.vmem [shape: f32[2,32], index: 2, kind: output, shape index: {}]
  %s3 = sld [smem:[#allocation0]]
  $region22: #{apply_node_func.3} parent=0
    _
  %s5 = ssub.s32 1, %s3
  %s6 = scalar_select 0, %s5, %s3
  // Predicated region
  $region2: #{apply_node_func.3} parent=0 // pred_check
    _
  $region3: #{apply_node_func.3} parent=0 // pred_check_branch
    %8 = sbr.rel (0) target = $region5
  $region4: #{apply_node_func.3} parent=0 // pred_region
    _
  $region5: #{apply_node_func.3} parent=0 // pred_fallthru
    _
  // Predicated region
  $region6: #{apply_node_func.3} parent=0 // pred_check
    _
  $region7: #{apply_node_func.3} parent=0 // pred_check_branch
    %10 = sbr.rel (0) target = $region9
  $region8: #{apply_node_func.3} parent=0 // pred_region
    _
  $region9: #{apply_node_func.3} parent=0 // pred_fallthru
    _
  %p11 = scmp.eq.s32.totalorder 0, 0
  // Predicated region
  $region10: #{apply_node_func.3} parent=0 // pred_check
    %p12 = pneg %p11
  $region11: #{apply_node_func.3} parent=0 // pred_check_branch
    %14 = sbr.rel (%p12) target = $region13
  $region12: #{apply_node_func.3} parent=0 // pred_region
    %vm15 = vcmask 254976
    %16 = vst.msk [vmem:[%s2] sm:$0x3] %vm15, 0.0
  $region13: #{apply_node_func.3} parent=0 // pred_fallthru
    _
  %v17 = vld [vmem:[%s0] sm:$0xff]
  %v18 = vld [vmem:[%s0 + $0x8] sm:$0xff]
  %v19 = vld [vmem:[%s0 + $0x10] sm:$0xff]
  %v20 = vld [vmem:[%s0 + $0x18] sm:$0xff]
  %v21 = vld [vmem:[%s0 + $0x20] sm:$0xff]
  %v22 = vld [vmem:[%s0 + $0x28] sm:$0xff]
  %v23 = vld [vmem:[%s0 + $0x30] sm:$0xff]
  %v24 = vld [vmem:[%s0 + $0x38] sm:$0xff]
  %v25 = vld [vmem:[%s1] sm:$0xff]
  %v26 = vld [vmem:[%s1 + $0x8] sm:$0xff]
  %vm27 = vcmask 130048
  %v29 = vsel %vm27, %v17, 0
  %v32 = vsel %vm27, %v18, 0
  %v35 = vsel %vm27, %v19, 0
  %v38 = vsel %vm27, %v20, 0
  %v41 = vsel %vm27, %v21, 0
  %v44 = vsel %vm27, %v22, 0
  %v47 = vsel %vm27, %v23, 0
  %v50 = vsel %vm27, %v24, 0
  %52 = vmatpush.msra.mxu0 0.0
  %53 = vmatpush.msra.mxu0 0.0
  %54 = vmatpush.msra.mxu0 0.0
  %55 = vmatpush.msra.mxu0 0.0
  %56 = vmatpush.msra.mxu0 0.0
  %57 = vmatpush.msra.mxu0 0.0
  %58 = vmatpush.msra.mxu0 0.0
  %59 = vmatpush.msra.mxu0 0.0
  %60 = vmatpush.msra.mxu0 0.0
  %61 = vmatpush.msra.mxu0 0.0
  %62 = vmatpush.msra.mxu0 0.0
  %63 = vmatpush.msra.mxu0 0.0
  %64 = vmatpush.msra.mxu0 0.0
  %65 = vmatpush.msra.mxu0 0.0
  %66 = vmatpush.msra.mxu0 %v26
  %67 = vmatpush.msra.mxu0 %v25
  %68 = vmatmul.f32.gmra.mxu0 %v29
  %v69 = vpop.f32.mrf.mxu0
  %v70 = vadd.f32 0.0, %v69
  %71 = vmatmul.f32.gmra.mxu0 %v32
  %v72 = vpop.f32.mrf.mxu0
  %v73 = vadd.f32 0.0, %v72
  %74 = vmatmul.f32.gmra.mxu0 %v35
  %v75 = vpop.f32.mrf.mxu0
  %v76 = vadd.f32 0.0, %v75
  %77 = vmatmul.f32.gmra.mxu0 %v38
  %v78 = vpop.f32.mrf.mxu0
  %v79 = vadd.f32 0.0, %v78
  %80 = vmatmul.f32.gmra.mxu0 %v41
  %v81 = vpop.f32.mrf.mxu0
  %v82 = vadd.f32 0.0, %v81
  %83 = vmatmul.f32.gmra.mxu0 %v44
  %v84 = vpop.f32.mrf.mxu0
  %v85 = vadd.f32 0.0, %v84
  %86 = vmatmul.f32.gmra.mxu0 %v47
  %v87 = vpop.f32.mrf.mxu0
  %v88 = vadd.f32 0.0, %v87
  %89 = vmatmul.f32.gmra.mxu0 %v50
  %v90 = vpop.f32.mrf.mxu0
  %v91 = vadd.f32 0.0, %v90
  %92 = vdwg.mxu0
  %v93 = vld [vmem:[%s2] sm:$0x3]
  %vm94 = vcmask 261120
  %v95 = vsel %vm94, %v70, 0.0
  %v96 = vsel %vm94, %v73, 0.0
  %v97 = vadd.f32 %v95, %v96
  %v98 = vsel %vm94, %v76, 0.0
  %v99 = vadd.f32 %v97, %v98
  %v100 = vsel %vm94, %v79, 0.0
  %v101 = vadd.f32 %v99, %v100
  %v102 = vsel %vm94, %v82, 0.0
  %v103 = vadd.f32 %v101, %v102
  %v104 = vsel %vm94, %v85, 0.0
  %v105 = vadd.f32 %v103, %v104
  %v106 = vsel %vm94, %v88, 0.0
  %v107 = vadd.f32 %v105, %v106
  %v108 = vsel %vm94, %v91, 0.0
  %v109 = vadd.f32 %v107, %v108
  %v110 = vrot.slane %v109, 4
  %v111 = vadd.f32 %v109, %v110
  %v112 = vrot.slane %v111, 2
  %v113 = vadd.f32 %v111, %v112
  %v114 = vrot.slane %v113, 1
  %v115 = vadd.f32 %v113, %v114
  %v116 = vmul.f32 %v70, %v70
  %v117 = vmul.f32 %v73, %v73
  %v118 = vmul.f32 %v76, %v76
  %v119 = vmul.f32 %v79, %v79
  %v120 = vmul.f32 %v82, %v82
  %v121 = vmul.f32 %v85, %v85
  %v122 = vmul.f32 %v88, %v88
  %v123 = vmul.f32 %v91, %v91
  %v124 = vsel %vm94, %v116, 0.0
  %v125 = vsel %vm94, %v117, 0.0
  %v126 = vadd.f32 %v124, %v125
  %v127 = vsel %vm94, %v118, 0.0
  %v128 = vadd.f32 %v126, %v127
  %v129 = vsel %vm94, %v119, 0.0
  %v130 = vadd.f32 %v128, %v129
  %v131 = vsel %vm94, %v120, 0.0
  %v132 = vadd.f32 %v130, %v131
  %v133 = vsel %vm94, %v121, 0.0
  %v134 = vadd.f32 %v132, %v133
  %v135 = vsel %vm94, %v122, 0.0
  %v136 = vadd.f32 %v134, %v135
  %v137 = vsel %vm94, %v123, 0.0
  %v138 = vadd.f32 %v136, %v137
  %v139 = vrot.slane %v138, 4
  %v140 = vadd.f32 %v138, %v139
  %v141 = vrot.slane %v140, 2
  %v142 = vadd.f32 %v140, %v141
  %v143 = vrot.slane %v142, 1
  %v144 = vadd.f32 %v142, %v143
  %vm145 = vcmask 1040384
  %v146 = vsel %vm145, %v115, %v144
  %v147 = vadd.f32 %v93, %v146
  %vm148 = vcmask 254976
  %149 = vst.msk [vmem:[%s2] sm:$0x3] %vm148, %v147
  // Predicated region
  $region14: #{apply_node_func.3} parent=0 // pred_check
    _
  $region15: #{apply_node_func.3} parent=0 // pred_check_branch
    %151 = sbr.rel (0) target = $region17
  $region16: #{apply_node_func.3} parent=0 // pred_region
    _
  $region17: #{apply_node_func.3} parent=0 // pred_fallthru
    _
  // Predicated region
  $region18: #{apply_node_func.3} parent=0 // pred_check
    _
  $region19: #{apply_node_func.3} parent=0 // pred_check_branch
    %153 = sbr.rel (0) target = $region21
  $region20: #{apply_node_func.3} parent=0 // pred_region
    _
  $region21: #{apply_node_func.3} parent=0 // pred_fallthru
    _

// kernel: apply_node_func.5
$region0: #{apply_node_func.5}
  #allocation0 [shape = 'u32[]', space=smem, size = 0x4, offset = 0x4, fixed_abs, tag = 'smem constant byte address 0x4 - core index']
  #allocation1 [shape = 'u32[72,128]{1,0:T(1,128)}', space=vmem, size = 0x9000, scoped, tag = 'internal scratch']
  %s0 = inlined_call_operand.vmem [shape: f32[64,32], index: 0, kind: input, shape index: {}]
  %s1 = inlined_call_operand.vmem [shape: f32[2,32], index: 1, kind: input, shape index: {}]
  %s2 = inlined_call_operand.vmem [shape: f32[2,32], index: 2, kind: input, shape index: {}]
  %s3 = inlined_call_operand.vmem [shape: f32[64,32], index: 3, kind: output, shape index: {}]
  %s4 = sld [smem:[#allocation0]]
  $region22: #{apply_node_func.5} parent=0
    _
  %s6 = ssub.s32 1, %s4
  %s7 = scalar_select 0, %s6, %s4
  // Predicated region
  $region2: #{apply_node_func.5} parent=0 // pred_check
    _
  $region3: #{apply_node_func.5} parent=0 // pred_check_branch
    %9 = sbr.rel (0) target = $region5
  $region4: #{apply_node_func.5} parent=0 // pred_region
    _
  $region5: #{apply_node_func.5} parent=0 // pred_fallthru
    _
  // Predicated region
  $region6: #{apply_node_func.5} parent=0 // pred_check
    _
  $region7: #{apply_node_func.5} parent=0 // pred_check_branch
    %11 = sbr.rel (0) target = $region9
  $region8: #{apply_node_func.5} parent=0 // pred_region
    _
  $region9: #{apply_node_func.5} parent=0 // pred_fallthru
    _
  // Predicated region
  $region10: #{apply_node_func.5} parent=0 // pred_check
    _
  $region11: #{apply_node_func.5} parent=0 // pred_check_branch
    %13 = sbr.rel (0) target = $region13
  $region12: #{apply_node_func.5} parent=0 // pred_region
    _
  $region13: #{apply_node_func.5} parent=0 // pred_fallthru
    _
  %v14 = vld [vmem:[%s1] sm:$0x3]
  %v15 = vld [vmem:[%s2] sm:$0x3]
  %v16 = vmul.f32 %v14, 0.016666668
  %v17 = vmul.f32 %v16, %v16
  %v19 = vrot.slane %v17, 7
  %v21 = vsub.f32 %v16, %v19
  %v22 = vmax.f32 %v21, 0.0
  %v23 = vadd.f32 %v22, 1e-05
  %v24 = vrsqrt.pop %v23
  %v25 = vmul.f32 %v24, %v23
  %v26 = vmul.f32 %v25, %v24
  %v27 = vmul.f32 0.5, %v26
  %v28 = vsub.f32 1.5, %v27
  %v29 = vmul.f32 %v24, %v28
  %vm30 = vweird.f32 %v23
  %vm31 = vweird.f32 %v24
  %vm32 = vmor %vm30, %vm31
  %v33 = vsel %vm32, %v24, %v29
  %v35 = vrot.slane %v33, 1
  %v37 = vmul.f32 %v15, %v35
  %v38 = vmul.f32 %v16, %v37
  %v40 = vrot.slane %v38, 7
  %v42 = vsub.f32 %v15, %v40
  %v43 = vld [vmem:[%s0] sm:$0xff]
  %v44 = vld [vmem:[%s0 + $0x8] sm:$0xff]
  %v45 = vld [vmem:[%s0 + $0x10] sm:$0xff]
  %v46 = vld [vmem:[%s0 + $0x18] sm:$0xff]
  %v47 = vld [vmem:[%s0 + $0x20] sm:$0xff]
  %v48 = vld [vmem:[%s0 + $0x28] sm:$0xff]
  %v49 = vld [vmem:[%s0 + $0x30] sm:$0xff]
  %v50 = vld [vmem:[%s0 + $0x38] sm:$0xff]
  %v51 = vperm.slane %v37, 0
  %v52 = vmul.f32 %v43, %v51
  %v53 = vmul.f32 %v44, %v51
  %v54 = vmul.f32 %v45, %v51
  %v55 = vmul.f32 %v46, %v51
  %v56 = vmul.f32 %v47, %v51
  %v57 = vmul.f32 %v48, %v51
  %v58 = vmul.f32 %v49, %v51
  %v59 = vmul.f32 %v50, %v51
  %v60 = vperm.slane %v42, 1
  %v61 = vadd.f32 %v52, %v60
  %v62 = vadd.f32 %v53, %v60
  %v63 = vadd.f32 %v54, %v60
  %v64 = vadd.f32 %v55, %v60
  %v65 = vadd.f32 %v56, %v60
  %v66 = vadd.f32 %v57, %v60
  %v67 = vadd.f32 %v58, %v60
  %v68 = vadd.f32 %v59, %v60
  %v69 = vmax.f32 %v61, 0.0
  %v70 = vmax.f32 %v62, 0.0
  %v71 = vmax.f32 %v63, 0.0
  %v72 = vmax.f32 %v64, 0.0
  %v73 = vmax.f32 %v65, 0.0
  %v74 = vmax.f32 %v66, 0.0
  %v75 = vmax.f32 %v67, 0.0
  %v76 = vmax.f32 %v68, 0.0
  %vm77 = vcmask 261120
  %78 = vst.msk [vmem:[%s3] sm:$0xff] %vm77, %v69
  %79 = vst.msk [vmem:[%s3 + $0x8] sm:$0xff] %vm77, %v70
  %80 = vst.msk [vmem:[%s3 + $0x10] sm:$0xff] %vm77, %v71
  %81 = vst.msk [vmem:[%s3 + $0x18] sm:$0xff] %vm77, %v72
  %82 = vst.msk [vmem:[%s3 + $0x20] sm:$0xff] %vm77, %v73
  %83 = vst.msk [vmem:[%s3 + $0x28] sm:$0xff] %vm77, %v74
  %84 = vst.msk [vmem:[%s3 + $0x30] sm:$0xff] %vm77, %v75
  %85 = vst.msk [vmem:[%s3 + $0x38] sm:$0xff] %vm77, %v76
  // Predicated region
  $region14: #{apply_node_func.5} parent=0 // pred_check
    _
  $region15: #{apply_node_func.5} parent=0 // pred_check_branch
    %87 = sbr.rel (0) target = $region17
  $region16: #{apply_node_func.5} parent=0 // pred_region
    _
  $region17: #{apply_node_func.5} parent=0 // pred_fallthru
    _
  // Predicated region
  $region18: #{apply_node_func.5} parent=0 // pred_check
    _
  $region19: #{apply_node_func.5} parent=0 // pred_check_branch
    %89 = sbr.rel (0) target = $region21
  $region20: #{apply_node_func.5} parent=0 // pred_region
    _
  $region21: #{apply_node_func.5} parent=0 // pred_fallthru
    _

// kernel: apply_node_func.4
$region0: #{apply_node_func.4}
  #allocation0 [shape = 'u32[]', space=smem, size = 0x4, offset = 0x4, fixed_abs, tag = 'smem constant byte address 0x4 - core index']
  #allocation1 [shape = 'u32[72,128]{1,0:T(1,128)}', space=vmem, size = 0x9000, scoped, tag = 'internal scratch']
  #allocation2 [shape = 'f32[2,32]{1,0:T(2,128)}', space=vmem, size = 0x400, scoped, tag = 'scratch operand']
  %s0 = inlined_call_operand.vmem [shape: f32[64,16], index: 0, kind: input, shape index: {}]
  %s1 = inlined_call_operand.vmem [shape: f32[16,32], index: 1, kind: input, shape index: {}]
  %s2 = inlined_call_operand.vmem [shape: f32[2,32], index: 2, kind: input, shape index: {}]
  %s3 = inlined_call_operand.vmem [shape: f32[2,32], index: 3, kind: input, shape index: {}]
  %s4 = inlined_call_operand.vmem [shape: f32[32,32], index: 4, kind: input, shape index: {}]
  %s5 = inlined_call_operand.vmem [shape: f32[64,32], index: 5, kind: output, shape index: {0}]
  %s6 = inlined_call_operand.vmem [shape: f32[2,32], index: 6, kind: output, shape index: {1}]
  %7 = xla_tuple %s5, %s6
  %s8 = sld [smem:[#allocation0]]
  $region46: #{apply_node_func.4} parent=0
    _
  %s10 = ssub.s32 1, %s8
  %s11 = scalar_select 0, %s10, %s8
  // Predicated region
  $region2: #{apply_node_func.4} parent=0 // pred_check
    _
  $region3: #{apply_node_func.4} parent=0 // pred_check_branch
    %13 = sbr.rel (0) target = $region5
  $region4: #{apply_node_func.4} parent=0 // pred_region
    _
  $region5: #{apply_node_func.4} parent=0 // pred_fallthru
    _
  // Predicated region
  $region6: #{apply_node_func.4} parent=0 // pred_check
    _
  $region7: #{apply_node_func.4} parent=0 // pred_check_branch
    %15 = sbr.rel (0) target = $region9
  $region8: #{apply_node_func.4} parent=0 // pred_region
    _
  $region9: #{apply_node_func.4} parent=0 // pred_fallthru
    _
  // Predicated region
  $region10: #{apply_node_func.4} parent=0 // pred_check
    _
  $region11: #{apply_node_func.4} parent=0 // pred_check_branch
    %17 = sbr.rel (0) target = $region13
  $region12: #{apply_node_func.4} parent=0 // pred_region
    _
  $region13: #{apply_node_func.4} parent=0 // pred_fallthru
    _
  // Predicated region
  $region14: #{apply_node_func.4} parent=0 // pred_check
    _
  $region15: #{apply_node_func.4} parent=0 // pred_check_branch
    %19 = sbr.rel (0) target = $region17
  $region16: #{apply_node_func.4} parent=0 // pred_region
    _
  $region17: #{apply_node_func.4} parent=0 // pred_fallthru
    _
  // Predicated region
  $region18: #{apply_node_func.4} parent=0 // pred_check
    _
  $region19: #{apply_node_func.4} parent=0 // pred_check_branch
    %21 = sbr.rel (0) target = $region21
  $region20: #{apply_node_func.4} parent=0 // pred_region
    _
  $region21: #{apply_node_func.4} parent=0 // pred_fallthru
    _
  %p22 = scmp.eq.s32.totalorder 0, 0
  // Predicated region
  $region22: #{apply_node_func.4} parent=0 // pred_check
    %p23 = pneg %p22
  $region23: #{apply_node_func.4} parent=0 // pred_check_branch
    %25 = sbr.rel (%p23) target = $region25
  $region24: #{apply_node_func.4} parent=0 // pred_region
    %v26 = vld [vmem:[%s2] sm:$0x3]
    %v27 = vld [vmem:[%s3] sm:$0x3]
    %v28 = vmul.f32 %v26, 0.016666668
    %v29 = vmul.f32 %v28, %v28
    %v31 = vrot.slane %v29, 7
    %v33 = vsub.f32 %v28, %v31
    %v34 = vmax.f32 %v33, 0.0
    %v35 = vadd.f32 %v34, 1e-05
    %v36 = vrsqrt.pop %v35
    %v37 = vmul.f32 %v36, %v35
    %v38 = vmul.f32 %v37, %v36
    %v39 = vmul.f32 0.5, %v38
    %v40 = vsub.f32 1.5, %v39
    %v41 = vmul.f32 %v36, %v40
    %vm42 = vweird.f32 %v35
    %vm43 = vweird.f32 %v36
    %vm44 = vmor %vm42, %vm43
    %v45 = vsel %vm44, %v36, %v41
    %v47 = vrot.slane %v45, 1
    %v49 = vmul.f32 %v27, %v47
    %v50 = vmul.f32 %v28, %v49
    %v52 = vrot.slane %v50, 7
    %v54 = vsub.f32 %v27, %v52
    %vm55 = vcmask 1040384
    %v56 = vsel %vm55, %v49, %v54
    %vm57 = vcmask 254976
    %58 = vst.msk [vmem:[#allocation2] sm:$0x3] %vm57, %v56
    %59 = vst.msk [vmem:[%s6] sm:$0x3] %vm57, 0.0
  $region25: #{apply_node_func.4} parent=0 // pred_fallthru
    _
  %v60 = vld [vmem:[%s0] sm:$0xff]
  %v61 = vld [vmem:[%s0 + $0x8] sm:$0xff]
  %v62 = vld [vmem:[%s0 + $0x10] sm:$0xff]
  %v63 = vld [vmem:[%s0 + $0x18] sm:$0xff]
  %v64 = vld [vmem:[%s0 + $0x20] sm:$0xff]
  %v65 = vld [vmem:[%s0 + $0x28] sm:$0xff]
  %v66 = vld [vmem:[%s0 + $0x30] sm:$0xff]
  %v67 = vld [vmem:[%s0 + $0x38] sm:$0xff]
  %v68 = vld [vmem:[%s1] sm:$0xff]
  %v69 = vld [vmem:[%s1 + $0x8] sm:$0xff]
  %vm70 = vcmask 130048
  %v72 = vsel %vm70, %v60, 0
  %v75 = vsel %vm70, %v61, 0
  %v78 = vsel %vm70, %v62, 0
  %v81 = vsel %vm70, %v63, 0
  %v84 = vsel %vm70, %v64, 0
  %v87 = vsel %vm70, %v65, 0
  %v90 = vsel %vm70, %v66, 0
  %v93 = vsel %vm70, %v67, 0
  %95 = vmatpush.msra.mxu0 0.0
  %96 = vmatpush.msra.mxu0 0.0
  %97 = vmatpush.msra.mxu0 0.0
  %98 = vmatpush.msra.mxu0 0.0
  %99 = vmatpush.msra.mxu0 0.0
  %100 = vmatpush.msra.mxu0 0.0
  %101 = vmatpush.msra.mxu0 0.0
  %102 = vmatpush.msra.mxu0 0.0
  %103 = vmatpush.msra.mxu0 0.0
  %104 = vmatpush.msra.mxu0 0.0
  %105 = vmatpush.msra.mxu0 0.0
  %106 = vmatpush.msra.mxu0 0.0
  %107 = vmatpush.msra.mxu0 0.0
  %108 = vmatpush.msra.mxu0 0.0
  %109 = vmatpush.msra.mxu0 %v69
  %110 = vmatpush.msra.mxu0 %v68
  %111 = vmatmul.f32.gmra.mxu0 %v72
  %v112 = vpop.f32.mrf.mxu0
  %v113 = vadd.f32 0.0, %v112
  %114 = vmatmul.f32.gmra.mxu0 %v75
  %v115 = vpop.f32.mrf.mxu0
  %v116 = vadd.f32 0.0, %v115
  %117 = vmatmul.f32.gmra.mxu0 %v78
  %v118 = vpop.f32.mrf.mxu0
  %v119 = vadd.f32 0.0, %v118
  %120 = vmatmul.f32.gmra.mxu0 %v81
  %v121 = vpop.f32.mrf.mxu0
  %v122 = vadd.f32 0.0, %v121
  %123 = vmatmul.f32.gmra.mxu0 %v84
  %v124 = vpop.f32.mrf.mxu0
  %v125 = vadd.f32 0.0, %v124
  %126 = vmatmul.f32.gmra.mxu0 %v87
  %v127 = vpop.f32.mrf.mxu0
  %v128 = vadd.f32 0.0, %v127
  %129 = vmatmul.f32.gmra.mxu0 %v90
  %v130 = vpop.f32.mrf.mxu0
  %v131 = vadd.f32 0.0, %v130
  %132 = vmatmul.f32.gmra.mxu0 %v93
  %v133 = vpop.f32.mrf.mxu0
  %v134 = vadd.f32 0.0, %v133
  %135 = vdwg.mxu0
  %v136 = vld [vmem:[#allocation2] sm:$0x1]
  %v137 = vperm.slane %v136, 0
  %v138 = vmul.f32 %v113, %v137
  %v139 = vmul.f32 %v116, %v137
  %v140 = vmul.f32 %v119, %v137
  %v141 = vmul.f32 %v122, %v137
  %v142 = vmul.f32 %v125, %v137
  %v143 = vmul.f32 %v128, %v137
  %v144 = vmul.f32 %v131, %v137
  %v145 = vmul.f32 %v134, %v137
  %v146 = vld [vmem:[#allocation2 + $0x1] sm:$0x1]
  %v147 = vperm.slane %v146, 0
  %v148 = vadd.f32 %v138, %v147
  %v149 = vadd.f32 %v139, %v147
  %v150 = vadd.f32 %v140, %v147
  %v151 = vadd.f32 %v141, %v147
  %v152 = vadd.f32 %v142, %v147
  %v153 = vadd.f32 %v143, %v147
  %v154 = vadd.f32 %v144, %v147
  %v155 = vadd.f32 %v145, %v147
  %v156 = vmax.f32 %v148, 0.0
  %v157 = vmax.f32 %v149, 0.0
  %v158 = vmax.f32 %v150, 0.0
  %v159 = vmax.f32 %v151, 0.0
  %v160 = vmax.f32 %v152, 0.0
  %v161 = vmax.f32 %v153, 0.0
  %v162 = vmax.f32 %v154, 0.0
  %v163 = vmax.f32 %v155, 0.0
  %v164 = vld [vmem:[%s4] sm:$0xff]
  %v165 = vld [vmem:[%s4 + $0x8] sm:$0xff]
  %v166 = vld [vmem:[%s4 + $0x10] sm:$0xff]
  %v167 = vld [vmem:[%s4 + $0x18] sm:$0xff]
  %vm168 = vcmask 261120
  %v170 = vsel %vm168, %v156, 0
  %v173 = vsel %vm168, %v157, 0
  %v176 = vsel %vm168, %v158, 0
  %v179 = vsel %vm168, %v159, 0
  %v182 = vsel %vm168, %v160, 0
  %v185 = vsel %vm168, %v161, 0
  %v188 = vsel %vm168, %v162, 0
  %v191 = vsel %vm168, %v163, 0
  %193 = vmatpush.msra.mxu0 0.0
  %194 = vmatpush.msra.mxu0 0.0
  %195 = vmatpush.msra.mxu0 0.0
  %196 = vmatpush.msra.mxu0 0.0
  %197 = vmatpush.msra.mxu0 0.0
  %198 = vmatpush.msra.mxu0 0.0
  %199 = vmatpush.msra.mxu0 0.0
  %200 = vmatpush.msra.mxu0 0.0
  %201 = vmatpush.msra.mxu0 0.0
  %202 = vmatpush.msra.mxu0 0.0
  %203 = vmatpush.msra.mxu0 0.0
  %204 = vmatpush.msra.mxu0 0.0
  %205 = vmatpush.msra.mxu0 %v167
  %206 = vmatpush.msra.mxu0 %v166
  %207 = vmatpush.msra.mxu0 %v165
  %208 = vmatpush.msra.mxu0 %v164
  %209 = vmatmul.f32.gmra.mxu0 %v170
  %v210 = vpop.f32.mrf.mxu0
  %v211 = vadd.f32 0.0, %v210
  %212 = vmatmul.f32.gmra.mxu0 %v173
  %v213 = vpop.f32.mrf.mxu0
  %v214 = vadd.f32 0.0, %v213
  %215 = vmatmul.f32.gmra.mxu0 %v176
  %v216 = vpop.f32.mrf.mxu0
  %v217 = vadd.f32 0.0, %v216
  %218 = vmatmul.f32.gmra.mxu0 %v179
  %v219 = vpop.f32.mrf.mxu0
  %v220 = vadd.f32 0.0, %v219
  %221 = vmatmul.f32.gmra.mxu0 %v182
  %v222 = vpop.f32.mrf.mxu0
  %v223 = vadd.f32 0.0, %v222
  %224 = vmatmul.f32.gmra.mxu0 %v185
  %v225 = vpop.f32.mrf.mxu0
  %v226 = vadd.f32 0.0, %v225
  %227 = vmatmul.f32.gmra.mxu0 %v188
  %v228 = vpop.f32.mrf.mxu0
  %v229 = vadd.f32 0.0, %v228
  %230 = vmatmul.f32.gmra.mxu0 %v191
  %v231 = vpop.f32.mrf.mxu0
  %v232 = vadd.f32 0.0, %v231
  %233 = vdwg.mxu0
  %234 = vst.msk [vmem:[%s5] sm:$0xff] %vm168, %v211
  %235 = vst.msk [vmem:[%s5 + $0x8] sm:$0xff] %vm168, %v214
  %236 = vst.msk [vmem:[%s5 + $0x10] sm:$0xff] %vm168, %v217
  %237 = vst.msk [vmem:[%s5 + $0x18] sm:$0xff] %vm168, %v220
  %238 = vst.msk [vmem:[%s5 + $0x20] sm:$0xff] %vm168, %v223
  %239 = vst.msk [vmem:[%s5 + $0x28] sm:$0xff] %vm168, %v226
  %240 = vst.msk [vmem:[%s5 + $0x30] sm:$0xff] %vm168, %v229
  %241 = vst.msk [vmem:[%s5 + $0x38] sm:$0xff] %vm168, %v232
  %v242 = vld [vmem:[%s6] sm:$0x3]
  %v243 = vsel %vm168, %v211, 0.0
  %v244 = vsel %vm168, %v214, 0.0
  %v245 = vadd.f32 %v243, %v244
  %v246 = vsel %vm168, %v217, 0.0
  %v247 = vadd.f32 %v245, %v246
  %v248 = vsel %vm168, %v220, 0.0
  %v249 = vadd.f32 %v247, %v248
  %v250 = vsel %vm168, %v223, 0.0
  %v251 = vadd.f32 %v249, %v250
  %v252 = vsel %vm168, %v226, 0.0
  %v253 = vadd.f32 %v251, %v252
  %v254 = vsel %vm168, %v229, 0.0
  %v255 = vadd.f32 %v253, %v254
  %v256 = vsel %vm168, %v232, 0.0
  %v257 = vadd.f32 %v255, %v256
  %v258 = vrot.slane %v257, 4
  %v259 = vadd.f32 %v257, %v258
  %v260 = vrot.slane %v259, 2
  %v261 = vadd.f32 %v259, %v260
  %v262 = vrot.slane %v261, 1
  %v263 = vadd.f32 %v261, %v262
  %v264 = vmul.f32 %v211, %v211
  %v265 = vmul.f32 %v214, %v214
  %v266 = vmul.f32 %v217, %v217
  %v267 = vmul.f32 %v220, %v220
  %v268 = vmul.f32 %v223, %v223
  %v269 = vmul.f32 %v226, %v226
  %v270 = vmul.f32 %v229, %v229
  %v271 = vmul.f32 %v232, %v232
  %v272 = vsel %vm168, %v264, 0.0
  %v273 = vsel %vm168, %v265, 0.0
  %v274 = vadd.f32 %v272, %v273
  %v275 = vsel %vm168, %v266, 0.0
  %v276 = vadd.f32 %v274, %v275
  %v277 = vsel %vm168, %v267, 0.0
  %v278 = vadd.f32 %v276, %v277
  %v279 = vsel %vm168, %v268, 0.0
  %v280 = vadd.f32 %v278, %v279
  %v281 = vsel %vm168, %v269, 0.0
  %v282 = vadd.f32 %v280, %v281
  %v283 = vsel %vm168, %v270, 0.0
  %v284 = vadd.f32 %v282, %v283
  %v285 = vsel %vm168, %v271, 0.0
  %v286 = vadd.f32 %v284, %v285
  %v287 = vrot.slane %v286, 4
  %v288 = vadd.f32 %v286, %v287
  %v289 = vrot.slane %v288, 2
  %v290 = vadd.f32 %v288, %v289
  %v291 = vrot.slane %v290, 1
  %v292 = vadd.f32 %v290, %v291
  %vm293 = vcmask 1040384
  %v294 = vsel %vm293, %v263, %v292
  %v295 = vadd.f32 %v242, %v294
  %vm296 = vcmask 254976
  %297 = vst.msk [vmem:[%s6] sm:$0x3] %vm296, %v295
  // Predicated region
  $region26: #{apply_node_func.4} parent=0 // pred_check
    %p298 = pneg %p22
  $region27: #{apply_node_func.4} parent=0 // pred_check_branch
    %300 = sbr.rel (%p298) target = $region29
  $region28: #{apply_node_func.4} parent=0 // pred_region
    %v301 = vld [vmem:[%s6] sm:$0x3]
    %v303 = vrot.slane %v232, 7
    %v306 = vrot.slane %v271, 6
    %v308 = vsel %vm293, %v303, %v306
    %v309 = vmul.f32 %v308, 4.0
    %v310 = vsub.f32 %v301, %v309
    %311 = vst.msk [vmem:[%s6] sm:$0x3] %vm296, %v310
  $region29: #{apply_node_func.4} parent=0 // pred_fallthru
    _
  // Predicated region
  $region30: #{apply_node_func.4} parent=0 // pred_check
    _
  $region31: #{apply_node_func.4} parent=0 // pred_check_branch
    %313 = sbr.rel (0) target = $region33
  $region32: #{apply_node_func.4} parent=0 // pred_region
    _
  $region33: #{apply_node_func.4} parent=0 // pred_fallthru
    _
  // Predicated region
  $region34: #{apply_node_func.4} parent=0 // pred_check
    _
  $region35: #{apply_node_func.4} parent=0 // pred_check_branch
    %315 = sbr.rel (0) target = $region37
  $region36: #{apply_node_func.4} parent=0 // pred_region
    _
  $region37: #{apply_node_func.4} parent=0 // pred_fallthru
    _
  // Predicated region
  $region38: #{apply_node_func.4} parent=0 // pred_check
    _
  $region39: #{apply_node_func.4} parent=0 // pred_check_branch
    %317 = sbr.rel (0) target = $region41
  $region40: #{apply_node_func.4} parent=0 // pred_region
    _
  $region41: #{apply_node_func.4} parent=0 // pred_fallthru
    _
  // Predicated region
  $region42: #{apply_node_func.4} parent=0 // pred_check
    _
  $region43: #{apply_node_func.4} parent=0 // pred_check_branch
    %319 = sbr.rel (0) target = $region45
  $region44: #{apply_node_func.4} parent=0 // pred_region
    _
  $region45: #{apply_node_func.4} parent=0 // pred_fallthru
    _

</llo_original>
